<compile_context>
chip_gen: v7x
topology: tpu7x:2x2x1
jax: 0.10.0
libtpu: 0.0.40
codegen_flags: <defaults>
</compile_context>

<pallas_src>
import jax
import jax.numpy as jnp
from jax import lax
from jax.experimental import pallas as pl
from jax.experimental.pallas import tpu as pltpu

BN_EPS = 1e-5


def _pick_l_tile(length, cap=32768):
    """Largest multiple of 128 that divides `length` and is <= cap; else full L."""
    if length % 128 == 0:
        t = min(cap, length)
        t -= t % 128
        while length % t:
            t -= 128
        return t
    return length  # full extent is always a legal block dim


# ---------------------------------------------------------------------------
# Pass 1: accumulate sum(x) (Cin,1) and Gram = X X^T (Cin,Cin) over all (N, L).
# ---------------------------------------------------------------------------
def stats_kernel(x_ref, sum_ref, gram_ref, sum_acc, gram_acc):
    # x_ref: (Cin, l_tile)   -- L on the lane axis, native NCL slice.
    first = (pl.program_id(0) == 0) & (pl.program_id(1) == 0)

    @pl.when(first)
    def _():
        sum_acc[...] = jnp.zeros_like(sum_acc)
        gram_acc[...] = jnp.zeros_like(gram_acc)

    x = x_ref[...]
    sum_acc[...] += jnp.sum(x, axis=1, keepdims=True)
    # X @ X^T, contracting the lane (L) axis of both operands (MXU "NT" matmul).
    gram_acc[...] += lax.dot_general(
        x, x, (((1,), (1,)), ((), ())), preferred_element_type=jnp.float32)

    sum_ref[...] = sum_acc[...]
    gram_ref[...] = gram_acc[...]


# ---------------------------------------------------------------------------
# Pass 2 (hot path): out = relu(W_fold @ x + b_fold), BN already folded in.
# ---------------------------------------------------------------------------
def matmul_relu_kernel(wf_ref, bf_ref, x_ref, o_ref):
    # wf_ref: (Cout, Cin)   bf_ref: (Cout, 1)
    # x_ref:  (Cin, l_tile) o_ref:  (Cout, l_tile)   -- lane-dense output
    y = jnp.dot(wf_ref[...], x_ref[...], preferred_element_type=jnp.float32)
    y = y + bf_ref[...]
    o_ref[...] = jnp.maximum(y, 0.0).astype(o_ref.dtype)


def conv1d_bn_relu(x, weight, bias, gamma, beta, *, l_tile=None):
    """x: (N, C_in, L). weight: (C_out, C_in, 1). Returns (N, C_out, L)."""
    n, c_in, length = x.shape
    c_out = weight.shape[0]
    m = n * length

    if l_tile is None:
        l_tile = _pick_l_tile(length)
    n_l = length // l_tile

    # ---- pass 1: global BN statistics of x (no HBM transposes, NCL native) ----
    sum_x, gram = pl.pallas_call(
        stats_kernel,
        out_shape=(jax.ShapeDtypeStruct((c_in, 1), jnp.float32),
                   jax.ShapeDtypeStruct((c_in, c_in), jnp.float32)),
        grid_spec=pltpu.PrefetchScalarGridSpec(
            num_scalar_prefetch=0,
            grid=(n, n_l),
            in_specs=[
                pl.BlockSpec((None, c_in, l_tile), lambda b, l: (b, 0, l)),
            ],
            out_specs=(
                pl.BlockSpec((c_in, 1), lambda b, l: (0, 0)),
                pl.BlockSpec((c_in, c_in), lambda b, l: (0, 0)),
            ),
            scratch_shapes=[
                pltpu.VMEM((c_in, 1), jnp.float32),
                pltpu.VMEM((c_in, c_in), jnp.float32),
            ],
        ),
        compiler_params=pltpu.CompilerParams(
            dimension_semantics=("arbitrary", "arbitrary")),
    )(x)

    # ---- fold BN (training-mode batch stats) into the conv weights (tiny) ----
    w = weight[:, :, 0].astype(jnp.float32)                      # (Cout, Cin)
    mean_x = sum_x * (1.0 / m)                                   # (Cin, 1)
    cov_x = gram * (1.0 / m) - mean_x @ mean_x.T                 # (Cin, Cin)
    mean_y = w @ mean_x + bias[:, None]                          # (Cout, 1)
    var_y = jnp.sum((w @ cov_x) * w, axis=1, keepdims=True)      # (Cout, 1)
    scale = gamma[:, None] * lax.rsqrt(var_y + BN_EPS)           # (Cout, 1)
    w_f = (w * scale).astype(x.dtype)                            # (Cout, Cin)
    b_f = (beta[:, None] + scale * (bias[:, None] - mean_y)).astype(jnp.float32)

    # ---- pass 2: lane-dense folded matmul + ReLU, NCL in -> NCL out ----------
    out = pl.pallas_call(
        matmul_relu_kernel,
        out_shape=jax.ShapeDtypeStruct((n, c_out, length), x.dtype),
        grid_spec=pltpu.PrefetchScalarGridSpec(
            num_scalar_prefetch=0,
            grid=(n, n_l),
            in_specs=[
                pl.BlockSpec((c_out, c_in), lambda b, l: (0, 0)),
                pl.BlockSpec((c_out, 1), lambda b, l: (0, 0)),
                pl.BlockSpec((None, c_in, l_tile), lambda b, l: (b, 0, l)),
            ],
            out_specs=pl.BlockSpec((None, c_out, l_tile),
                                   lambda b, l: (b, 0, l)),
        ),
        compiler_params=pltpu.CompilerParams(
            dimension_semantics=("parallel", "parallel")),
    )(w_f, b_f, x)

    return out


def reference(x, weight, bias, gamma, beta):
    # Pure-JAX reference of the PyTorch forward (Conv1d k=1 -> BN train -> ReLU).
    y = jnp.einsum("ncl,oc->nol", x, weight[:, :, 0]) + bias[None, :, None]
    mean = jnp.mean(y, axis=(0, 2), keepdims=True)
    var = jnp.mean((y - mean) ** 2, axis=(0, 2), keepdims=True)
    y_hat = (y - mean) / jnp.sqrt(var + BN_EPS)
    out = y_hat * gamma[None, :, None] + beta[None, :, None]
    return jnp.maximum(out, 0.0)


if __name__ == "__main__":
    key = jax.random.PRNGKey(0)
    k_x, k_w, k_b, k_g, k_be = jax.random.split(key, 5)

    N, C_IN, C_OUT, L = 2, 4, 8, 16

    x = jax.random.normal(k_x, (N, C_IN, L), dtype=jnp.float32)
    weight = jax.random.normal(k_w, (C_OUT, C_IN, 1), dtype=jnp.float32) * 0.5
    bias = jax.random.normal(k_b, (C_OUT,), dtype=jnp.float32) * 0.1
    gamma = 1.0 + 0.1 * jax.random.normal(k_g, (C_OUT,), dtype=jnp.float32)
    beta = 0.1 * jax.random.normal(k_be, (C_OUT,), dtype=jnp.float32)

    out = conv1d_bn_relu(x, weight, bias, gamma, beta)
    jax.block_until_ready(out)

    ref = reference(x, weight, bias, gamma, beta)
    assert out.shape == (N, C_OUT, L)
    assert jnp.allclose(out, ref, atol=1e-4, rtol=1e-4), "mismatch vs reference"

    # TODO(synk): BatchNorm1d's running_mean/running_var buffer updates are
    # training-side state and are not part of the forward output, so they are
    # not produced here.

    print("KERNEL_OK")
</pallas_src>

<mosaic_0001>
module attributes {stable_mosaic.version = 11 : i64} {
  func.func @stats_kernel(%arg0: i32, %arg1: i32, %arg2: memref<1x4x16xf32, #tpu.memory_space<vmem>>, %arg3: memref<4x1xf32, #tpu.memory_space<vmem>>, %arg4: memref<4x4xf32, #tpu.memory_space<vmem>>, %arg5: memref<4x1xf32, #tpu.memory_space<vmem>>, %arg6: memref<4x4xf32, #tpu.memory_space<vmem>>) attributes {dimension_semantics = [#tpu.dimension_semantics<arbitrary>, #tpu.dimension_semantics<arbitrary>], iteration_bounds = array<i64: 2, 1>, scalar_prefetch = 0 : i64, scratch_operands = 2 : i64, tpu.core_type = #tpu.core_type<tc>, window_params = [{transform_indices = @transform_0, window_bounds = array<i64: 1, 4, 16>}, {pipeline_mode = #tpu.pipeline_mode<synchronous>, transform_indices = @transform_1, window_bounds = array<i64: 4, 1>}, {pipeline_mode = #tpu.pipeline_mode<synchronous>, transform_indices = @transform_2, window_bounds = array<i64: 4, 4>}]} {
    %c0_i32 = arith.constant 0 : i32
    %0 = arith.cmpi eq, %arg0, %c0_i32 : i32
    %c0_i32_0 = arith.constant 0 : i32
    %1 = arith.cmpi eq, %arg1, %c0_i32_0 : i32
    %2 = arith.andi %0, %1 : i1
    %3 = arith.extui %2 : i1 to i32
    %c0_i32_1 = arith.constant 0 : i32
    %4 = arith.cmpi ne, %3, %c0_i32_1 : i32
    scf.if %4 {
      %cst_21 = arith.constant 0.000000e+00 : f32
      %20 = vector.broadcast %cst_21 : f32 to vector<4x1xf32>
      %c0_22 = arith.constant 0 : index
      %c0_23 = arith.constant 0 : index
      %21 = vector.load %arg5[%c0_22, %c0_23] : memref<4x1xf32, #tpu.memory_space<vmem>>, vector<4x1xf32>
      tpu.vector_store %arg5[%c0_22, %c0_23], %20 {strides = array<i32>} : memref<4x1xf32, #tpu.memory_space<vmem>>, vector<4x1xf32>,
      %cst_24 = arith.constant 0.000000e+00 : f32
      %22 = vector.broadcast %cst_24 : f32 to vector<4x4xf32>
      %c0_25 = arith.constant 0 : index
      %c0_26 = arith.constant 0 : index
      %23 = vector.load %arg6[%c0_25, %c0_26] : memref<4x4xf32, #tpu.memory_space<vmem>>, vector<4x4xf32>
      tpu.vector_store %arg6[%c0_25, %c0_26], %22 {strides = array<i32>} : memref<4x4xf32, #tpu.memory_space<vmem>>, vector<4x4xf32>,
    } else {
    }
    %c0 = arith.constant 0 : index
    %c0_2 = arith.constant 0 : index
    %c0_3 = arith.constant 0 : index
    %5 = vector.load %arg2[%c0, %c0_2, %c0_3] : memref<1x4x16xf32, #tpu.memory_space<vmem>>, vector<1x4x16xf32>
    %6 = vector.shape_cast %5 : vector<1x4x16xf32> to vector<4x16xf32>
    %c0_4 = arith.constant 0 : index
    %c0_5 = arith.constant 0 : index
    %7 = vector.load %arg5[%c0_4, %c0_5] : memref<4x1xf32, #tpu.memory_space<vmem>>, vector<4x1xf32>
    %cst = arith.constant dense<0.000000e+00> : vector<4xf32>
    %8 = vector.multi_reduction <add>, %6, %cst [1] : vector<4x16xf32> to vector<4xf32>
    %9 = vector.shape_cast %8 : vector<4xf32> to vector<4x1xf32>
    %10 = arith.addf %7, %9 : vector<4x1xf32>
    %c0_6 = arith.constant 0 : index
    %c0_7 = arith.constant 0 : index
    %11 = vector.load %arg5[%c0_6, %c0_7] : memref<4x1xf32, #tpu.memory_space<vmem>>, vector<4x1xf32>
    tpu.vector_store %arg5[%c0_6, %c0_7], %10 {strides = array<i32>} : memref<4x1xf32, #tpu.memory_space<vmem>>, vector<4x1xf32>,
    %c0_8 = arith.constant 0 : index
    %c0_9 = arith.constant 0 : index
    %12 = vector.load %arg6[%c0_8, %c0_9] : memref<4x4xf32, #tpu.memory_space<vmem>>, vector<4x4xf32>
    %cst_10 = arith.constant dense<0.000000e+00> : vector<4x4xf32>
    %13 = tpu.matmul %6, %6, %cst_10 {dimension_numbers = #tpu.dot_dimension_numbers<[1], [1], [0], [0], [0, 0, 1, 0], [], []>} : vector<4x16xf32>, vector<4x16xf32>, vector<4x4xf32> -> vector<4x4xf32>
    %14 = arith.addf %12, %13 : vector<4x4xf32>
    %c0_11 = arith.constant 0 : index
    %c0_12 = arith.constant 0 : index
    %15 = vector.load %arg6[%c0_11, %c0_12] : memref<4x4xf32, #tpu.memory_space<vmem>>, vector<4x4xf32>
    tpu.vector_store %arg6[%c0_11, %c0_12], %14 {strides = array<i32>} : memref<4x4xf32, #tpu.memory_space<vmem>>, vector<4x4xf32>,
    %c0_13 = arith.constant 0 : index
    %c0_14 = arith.constant 0 : index
    %16 = vector.load %arg5[%c0_13, %c0_14] : memref<4x1xf32, #tpu.memory_space<vmem>>, vector<4x1xf32>
    %c0_15 = arith.constant 0 : index
    %c0_16 = arith.constant 0 : index
    %17 = vector.load %arg3[%c0_15, %c0_16] : memref<4x1xf32, #tpu.memory_space<vmem>>, vector<4x1xf32>
    tpu.vector_store %arg3[%c0_15, %c0_16], %16 {strides = array<i32>} : memref<4x1xf32, #tpu.memory_space<vmem>>, vector<4x1xf32>,
    %c0_17 = arith.constant 0 : index
    %c0_18 = arith.constant 0 : index
    %18 = vector.load %arg6[%c0_17, %c0_18] : memref<4x4xf32, #tpu.memory_space<vmem>>, vector<4x4xf32>
    %c0_19 = arith.constant 0 : index
    %c0_20 = arith.constant 0 : index
    %19 = vector.load %arg4[%c0_19, %c0_20] : memref<4x4xf32, #tpu.memory_space<vmem>>, vector<4x4xf32>
    tpu.vector_store %arg4[%c0_19, %c0_20], %18 {strides = array<i32>} : memref<4x4xf32, #tpu.memory_space<vmem>>, vector<4x4xf32>,
    return
  }
  func.func @transform_0(%arg0: i32, %arg1: i32) -> (i32, i32, i32) {
    %c0_i32 = arith.constant 0 : i32
    %c0_i32_0 = arith.constant 0 : i32
    return %arg0, %c0_i32, %arg1 : i32, i32, i32
  }
  func.func @transform_1(%arg0: i32, %arg1: i32) -> (i32, i32) {
    %c0_i32 = arith.constant 0 : i32
    %c0_i32_0 = arith.constant 0 : i32
    %c0_i32_1 = arith.constant 0 : i32
    return %c0_i32, %c0_i32_0 : i32, i32
  }
  func.func @transform_2(%arg0: i32, %arg1: i32) -> (i32, i32) {
    %c0_i32 = arith.constant 0 : i32
    %c0_i32_0 = arith.constant 0 : i32
    %c0_i32_1 = arith.constant 0 : i32
    return %c0_i32, %c0_i32_0 : i32, i32
  }
}

</mosaic_0001>

<llo_original>
// kernel: tpu_custom_call.1
$region0: #{tpu_custom_call.1}
  #allocation0 [shape = 'u32[]', space=smem, size = 0x4, offset = 0x4, fixed_abs, tag = 'smem constant byte address 0x4 - core index']
  #allocation1 [shape = 'u32[144,128]{1,0:T(1,128)}', space=vmem, size = 0x12000, scoped, tag = 'internal scratch']
  #allocation2 [shape = 'f32[4,1]{1,0:T(4,128)}', space=vmem, size = 0x800, scoped, tag = 'scratch operand']
  #allocation3 [shape = 'f32[4,4]{1,0:T(4,128)}', space=vmem, size = 0x800, scoped, tag = 'scratch operand']
  %s0 = inlined_call_operand.hbm [shape: f32[2,4,16], index: 0, kind: input, shape index: {}]
  %s1 = inlined_call_operand.vmem [shape: f32[4,1], index: 1, kind: output, shape index: {0}]
  %s2 = inlined_call_operand.hbm [shape: f32[4,4], index: 2, kind: output, shape index: {1}]
  %3 = xla_tuple %s1, %s2
  %s4 = sld [smem:[#allocation0]]
  $region53: #{tpu_custom_call.1} parent=0
    _
  %s6 = ssub.s32 1, %s4
  %s7 = scalar_select 0, %s6, %s4
  $region1: #{tpu_custom_call.1} parent=0
    #allocation4 [shape = 'u8[4096]{0}', space=vmem, size = 0x1000, scoped, tag = 'input window, operand 0']
    #allocation5 [shape = 's32[2]{0}', space=sflag, size = 0x8, scoped, tag = 'scoped memory for tpu_custom_call.1']
    #allocation6 [shape = 's32[2]{0}', space=sflag, size = 0x8, scoped, tag = 'scoped memory for tpu_custom_call.1']
    #allocation7 [shape = 'u8[2048]{0}', space=vmem, size = 0x800, scoped, tag = 'output window, operand 1, single buffered']
    %8 = vsyncpa [#allocation5], 0
    %s9 = scalar_lea.sflag [#allocation5], 1
    %10 = vsyncpa %s9, 0
    %11 = vsyncpa [#allocation6], 0
    loop: start=0, step=1, limit=4
    $region2: #{tpu_custom_call.1} parent=1 // loop_pre_header
      _
    $region3: #{tpu_custom_call.1} parent=1 // loop_header
      %s13 = sphi 0, %s17
      %p14 = scmp.ge.s32.totalorder %s13, 4
      %s20 = sphi 0, %s32
      %s21 = sphi 0, %s28
      %s22 = sphi 0, %s20
      %s23 = sphi 0, %s21
      %s24 = sphi 0, %s22
      %s25 = sphi 0, %s23
      %s37 = sphi 0, %s39
      %s40 = sphi 0, %s37
      %s41 = sphi 0, %s40
      %s57 = sphi 0, %s41
      %s61 = sphi 0, %s61
      %s63 = sphi 0, %s61
      %s64 = sphi 0, %s63
      %s78 = sphi 0, %s64
      %s82 = sphi 0, %s82
      %s84 = sphi 0, %s82
      %s85 = sphi 0, %s84
      %s99 = sphi 0, %s85
    $region4: #{tpu_custom_call.1} parent=1 // loop_header_branch
      %16 = sbr.rel (%p14) target = $region8
    $region5: #{tpu_custom_call.1} parent=1 // loop_body
      %s18 = ssub.s32 %s13, 1
      %s19 = ssub.s32 %s13, 2
      %s26 = sadd.s32 1, %s21
      %p27 = scmp.ge.s32.totalorder %s26, 1
      %s28 = scalar_select %p27, 0, %s26
      %s29 = sadd.s32 1, %s20
      %s30 = scalar_select %p27, %s29, %s20
      %p31 = scmp.ge.s32.totalorder %s30, 2
      %s32 = scalar_select %p31, 0, %s30
      %s33 = ssub.s32 %s20, %s32
      %s34 = ssub.s32 %s21, %s28
      %s35 = sor.u32 %s33, %s34
      %p36 = scmp.eq.s32.totalorder %s35, 0
      %s38 = sadd.s32 %s37, 1
      %s39 = scalar_select %p36, %s37, %s38
      %p42 = pneg %p36
      %p43 = scmp.eq.s32.totalorder %s13, 1
      %p44 = por %p42, %p43
      %p45 = scmp.ne.s32.totalorder %s37, %s40
      %p46 = scmp.eq.s32.totalorder %s13, 0
      %p47 = por %p45, %p46
      %p48 = scmp.ne.s32.totalorder %s37, %s40
      %p49 = scmp.eq.s32.totalorder %s18, 1
      %p50 = por %p48, %p49
      %p51 = scmp.ne.s32.totalorder %s40, %s41
      %p52 = scmp.eq.s32.totalorder %s18, 0
      %p53 = por %p51, %p52
      %p54 = scmp.ne.s32.totalorder %s40, %s41
      %p55 = scmp.eq.s32.totalorder %s19, 1
      %p56 = por %p54, %p55
      %p58 = scmp.ne.s32.totalorder %s41, %s57
      %p59 = scmp.eq.s32.totalorder %s19, 0
      %p60 = por %p58, %p59
      %s62 = sadd.s32 %s61, 1
      %p65 = scmp.eq.s32.totalorder %s13, 1
      %p66 = scmp.ne.s32.totalorder %s61, %s63
      %p67 = scmp.eq.s32.totalorder %s13, 0
      %p68 = por %p66, %p67
      %p69 = scmp.ne.s32.totalorder %s61, %s63
      %p70 = scmp.eq.s32.totalorder %s18, 1
      %p71 = por %p69, %p70
      %p72 = scmp.ne.s32.totalorder %s63, %s64
      %p73 = scmp.eq.s32.totalorder %s18, 0
      %p74 = por %p72, %p73
      %p75 = scmp.ne.s32.totalorder %s63, %s64
      %p76 = scmp.eq.s32.totalorder %s19, 1
      %p77 = por %p75, %p76
      %p79 = scmp.ne.s32.totalorder %s64, %s78
      %p80 = scmp.eq.s32.totalorder %s19, 0
      %p81 = por %p79, %p80
      %s83 = sadd.s32 %s82, 1
      %p86 = scmp.eq.s32.totalorder %s13, 1
      %p87 = scmp.ne.s32.totalorder %s82, %s84
      %p88 = scmp.eq.s32.totalorder %s13, 0
      %p89 = por %p87, %p88
      %p90 = scmp.ne.s32.totalorder %s82, %s84
      %p91 = scmp.eq.s32.totalorder %s18, 1
      %p92 = por %p90, %p91
      %p93 = scmp.ne.s32.totalorder %s84, %s85
      %p94 = scmp.eq.s32.totalorder %s18, 0
      %p95 = por %p93, %p94
      %p96 = scmp.ne.s32.totalorder %s84, %s85
      %p97 = scmp.eq.s32.totalorder %s19, 1
      %p98 = por %p96, %p97
      %p100 = scmp.ne.s32.totalorder %s85, %s99
      %p101 = scmp.eq.s32.totalorder %s19, 0
      %p102 = por %p100, %p101
      %p103 = scmp.le.s32.totalorder 1, %s13
      %p104 = scmp.lt.s32.totalorder %s13, 3
      %p105 = pnand %p103, %p104
      %p106 = pneg %p105
      // Predicated region
      $region9: #{tpu_custom_call.1} parent=5 // pred_check
        _
      $region10: #{tpu_custom_call.1} parent=5 // pred_check_branch
        %108 = sbr.rel (%p105) target = $region12
      $region11: #{tpu_custom_call.1} parent=5 // pred_region
        %s109 = ssub.s32 %s13, 1
      $region12: #{tpu_custom_call.1} parent=5 // pred_fallthru
        _
      %p110 = scmp.lt.s32.totalorder %s13, 2
      // Predicated region
      $region13: #{tpu_custom_call.1} parent=5 // pred_check
        %p111 = pneg %p110
      $region14: #{tpu_custom_call.1} parent=5 // pred_check_branch
        %113 = sbr.rel (%p111) target = $region16
      $region15: #{tpu_custom_call.1} parent=5 // pred_region
        // Predicated region
        $region17: #{tpu_custom_call.1} parent=15 // pred_check
          %p114 = pneg %p47
        $region18: #{tpu_custom_call.1} parent=15 // pred_check_branch
          %116 = sbr.rel (%p114) target = $region20
        $region19: #{tpu_custom_call.1} parent=15 // pred_region
          %s117 = sand.u32 %s37, 1
          %s118 = scalar_lea.sflag [#allocation5], %s117
          %s119 = sand.u32 %s37, 1
          %s120 = smul.addr %s119, 4
          %s121 = scalar_lea.vmem [#allocation4], %s120
          %s123 = ssub.s32 64, 64
          %124 = vsyncadd %s118, %s123
          %s125 = sadd.s32 %s21, %s20
          %s126 = smul.addr %s125, 64
          %s127 = scalar_lea.hbm %s0, %s126
          %s129 = sshll.u32 %s121, 4
          %s130 = int_to_ptr.vmem [resolvable:$true] %s129
          %132 = dma.hbm_to_vmem [thread:$0]  %s127, 64, %s130, %s118
        $region20: #{tpu_custom_call.1} parent=15 // pred_fallthru
          _
      $region16: #{tpu_custom_call.1} parent=5 // pred_fallthru
        _
      %p133 = scmp.le.s32.totalorder 1, %s13
      %p134 = scmp.lt.s32.totalorder %s13, 3
      %p135 = pnand %p133, %p134
      %p136 = pneg %p135
      // Predicated region
      $region21: #{tpu_custom_call.1} parent=5 // pred_check
        _
      $region22: #{tpu_custom_call.1} parent=5 // pred_check_branch
        %138 = sbr.rel (%p135) target = $region24
      $region23: #{tpu_custom_call.1} parent=5 // pred_region
        %s139 = ssub.s32 %s13, 1
        %s140 = sand.u32 %s40, 1
        %s141 = scalar_lea.sflag [#allocation5], %s140
        %s142 = sand.u32 %s40, 1
        %s143 = smul.addr %s142, 4
        %s144 = scalar_lea.vmem [#allocation4], %s143
        // Predicated region
        $region25: #{tpu_custom_call.1} parent=23 // pred_check
          %p145 = pneg %p53
        $region26: #{tpu_custom_call.1} parent=23 // pred_check_branch
          %147 = sbr.rel (%p145) target = $region28
        $region27: #{tpu_custom_call.1} parent=23 // pred_region
          %148 = dma.done %s141, 64
        $region28: #{tpu_custom_call.1} parent=23 // pred_fallthru
          _
        %s149 = sand.u32 %s40, 1
        %s150 = scalar_lea.sflag [#allocation5], %s149
        %s151 = sand.u32 %s40, 1
        %s152 = smul.addr %s151, 4
        %s153 = scalar_lea.vmem [#allocation4], %s152
        %p154 = pneg %p53
        %p155 = pneg %p50
        %p156 = pneg %p74
        %p157 = pneg %p71
        %p158 = pneg %p95
        %p159 = pneg %p92
        %p160 = scmp.eq.s32.totalorder %s22, 0
        %p161 = scmp.eq.s32.totalorder %s23, 0
        %p162 = pnand %p160, %p161
        %p163 = pneg %p162
        // Predicated region
        $region29: #{tpu_custom_call.1} parent=23 // pred_check
          _
        $region30: #{tpu_custom_call.1} parent=23 // pred_check_branch
          %165 = sbr.rel (%p162) target = $region32
        $region31: #{tpu_custom_call.1} parent=23 // pred_region
          %vm166 = vcmask 3072
          %167 = vst.msk [vmem:[#allocation2] sm:$0xf] %vm166, 0.0
          %vm168 = vcmask 27648
          %169 = vst.msk [vmem:[#allocation3] sm:$0xf] %vm168, 0.0
        $region32: #{tpu_custom_call.1} parent=23 // pred_fallthru
          _
        %v170 = vld [vmem:[%s144] sm:$0xf]
        %v171 = vld [vmem:[#allocation2] sm:$0xf]
        %vm172 = vcmask 125952
        %v173 = vsel %vm172, %v170, 0.0
        %174 = vadd.xlane.f32.xlu0 %v173
        %v175 = vpop.xlane.xlu0 %174
        %v176 = vadd.f32 %v171, %v175
        %vm177 = vcmask 3072
        %178 = vst.msk [vmem:[#allocation2] sm:$0xf] %vm177, %v176
        %v179 = vld [vmem:[#allocation3] sm:$0xf]
        %vm180 = vcmask 130048
        %v182 = vsel %vm180, %v170, 0
        %184 = vmatprep.subr.mxu0 0.0
        %185 = vmatpush1.xpose.msra.mxu0 %v182
        %186 = vmatprep.subr.mxu0 0.0
        %187 = vmatpush1.xpose.msra.mxu0 0.0
        %188 = vmatprep.subr.mxu0 0.0
        %189 = vmatpush1.xpose.msra.mxu0 0.0
        %190 = vmatprep.subr.mxu0 0.0
        %191 = vmatpush1.xpose.msra.mxu0 0.0
        %192 = vmatprep.subr.mxu0 0.0
        %193 = vmatpush1.xpose.msra.mxu0 0.0
        %194 = vmatprep.subr.mxu0 0.0
        %195 = vmatpush1.xpose.msra.mxu0 0.0
        %196 = vmatprep.subr.mxu0 0.0
        %197 = vmatpush1.xpose.msra.mxu0 0.0
        %198 = vmatprep.subr.mxu0 0.0
        %199 = vmatpush1.xpose.msra.mxu0 0.0
        %200 = vmatprep.subr.mxu0 0.0
        %201 = vmatpush1.xpose.msra.mxu0 0.0
        %202 = vmatprep.subr.mxu0 0.0
        %203 = vmatpush1.xpose.msra.mxu0 0.0
        %204 = vmatprep.subr.mxu0 0.0
        %205 = vmatpush1.xpose.msra.mxu0 0.0
        %206 = vmatprep.subr.mxu0 0.0
        %207 = vmatpush1.xpose.msra.mxu0 0.0
        %208 = vmatprep.subr.mxu0 0.0
        %209 = vmatpush1.xpose.msra.mxu0 0.0
        %210 = vmatprep.subr.mxu0 0.0
        %211 = vmatpush1.xpose.msra.mxu0 0.0
        %212 = vmatprep.subr.mxu0 0.0
        %213 = vmatpush1.xpose.msra.mxu0 0.0
        %214 = vmatprep.subr.mxu0 0.0
        %215 = vmatpush1.xpose.msra.mxu0 0.0
        %216 = vmatprep.subr.mxu0 0.0
        %217 = vmatpush1.xpose.msra.mxu0 0.0
        %218 = vmatprep.subr.mxu0 0.0
        %219 = vmatpush1.xpose.msra.mxu0 0.0
        %220 = vmatprep.subr.mxu0 0.0
        %221 = vmatpush1.xpose.msra.mxu0 0.0
        %222 = vmatprep.subr.mxu0 0.0
        %223 = vmatpush1.xpose.msra.mxu0 0.0
        %224 = vmatprep.subr.mxu0 0.0
        %225 = vmatpush1.xpose.msra.mxu0 0.0
        %226 = vmatprep.subr.mxu0 0.0
        %227 = vmatpush1.xpose.msra.mxu0 0.0
        %228 = vmatprep.subr.mxu0 0.0
        %229 = vmatpush1.xpose.msra.mxu0 0.0
        %230 = vmatprep.subr.mxu0 0.0
        %231 = vmatpush1.xpose.msra.mxu0 0.0
        %232 = vmatprep.subr.mxu0 0.0
        %233 = vmatpush1.xpose.msra.mxu0 0.0
        %234 = vmatprep.subr.mxu0 0.0
        %235 = vmatpush1.xpose.msra.mxu0 0.0
        %236 = vmatprep.subr.mxu0 0.0
        %237 = vmatpush1.xpose.msra.mxu0 0.0
        %238 = vmatprep.subr.mxu0 0.0
        %239 = vmatpush1.xpose.msra.mxu0 0.0
        %240 = vmatprep.subr.mxu0 0.0
        %241 = vmatpush1.xpose.msra.mxu0 0.0
        %242 = vmatprep.subr.mxu0 0.0
        %243 = vmatpush1.xpose.msra.mxu0 0.0
        %244 = vmatprep.subr.mxu0 0.0
        %245 = vmatpush1.xpose.msra.mxu0 0.0
        %246 = vmatprep.subr.mxu0 0.0
        %247 = vmatpush1.xpose.msra.mxu0 0.0
        %248 = vmatprep.mubr.f32.mxu0 0.0
        %249 = vmatmul.mubr.f32.gmra.mrb[0].mxu0 %v182
        %v250 = vpop.f32.mrb[0].mxu0
        %v251 = vadd.f32 0.0, %v250
        %v252 = vpop.f32.mrb[0].mxu0
        %253 = vdwg.mxu0
        %v254 = vadd.f32 %v179, %v251
        %vm255 = vcmask 27648
        %256 = vst.msk [vmem:[#allocation3] sm:$0xf] %vm255, %v254
        %v257 = vld [vmem:[#allocation2] sm:$0xf]
        %258 = vst.msk [vmem:[%s1] sm:$0xf] %vm177, %v257
        %v259 = vld [vmem:[#allocation3] sm:$0xf]
        %260 = vst.msk [vmem:[#allocation7] sm:$0xf] %vm255, %v259
        // Predicated region
        $region33: #{tpu_custom_call.1} parent=23 // pred_check
          %p261 = pneg %p71
        $region34: #{tpu_custom_call.1} parent=23 // pred_check_branch
          %263 = sbr.rel (%p261) target = $region36
        $region35: #{tpu_custom_call.1} parent=23 // pred_region
          _
        $region36: #{tpu_custom_call.1} parent=23 // pred_fallthru
          _
        // Predicated region
        $region37: #{tpu_custom_call.1} parent=23 // pred_check
          %p264 = pneg %p92
        $region38: #{tpu_custom_call.1} parent=23 // pred_check_branch
          %266 = sbr.rel (%p264) target = $region40
        $region39: #{tpu_custom_call.1} parent=23 // pred_region
          %s268 = ssub.s32 64, 64
          %269 = vsyncadd [#allocation6], %s268
          %s271 = sshll.u32 [#allocation7], 4
          %s272 = int_to_ptr.vmem [resolvable:$true] %s271
          %274 = dma.vmem_to_hbm [thread:$0]  %s272, 64, %s2, [#allocation6]
        $region40: #{tpu_custom_call.1} parent=23 // pred_fallthru
          _
        // Predicated region
        $region41: #{tpu_custom_call.1} parent=23 // pred_check
          %p275 = pneg %p71
        $region42: #{tpu_custom_call.1} parent=23 // pred_check_branch
          %277 = sbr.rel (%p275) target = $region44
        $region43: #{tpu_custom_call.1} parent=23 // pred_region
          _
        $region44: #{tpu_custom_call.1} parent=23 // pred_fallthru
          _
        // Predicated region
        $region45: #{tpu_custom_call.1} parent=23 // pred_check
          %p278 = pneg %p92
        $region46: #{tpu_custom_call.1} parent=23 // pred_check_branch
          %280 = sbr.rel (%p278) target = $region48
        $region47: #{tpu_custom_call.1} parent=23 // pred_region
          %281 = dma.done [#allocation6], 64
        $region48: #{tpu_custom_call.1} parent=23 // pred_fallthru
          _
      $region24: #{tpu_custom_call.1} parent=5 // pred_fallthru
        _
      %p282 = scmp.le.s32.totalorder 2, %s13
      // Predicated region
      $region49: #{tpu_custom_call.1} parent=5 // pred_check
        %p283 = pneg %p282
      $region50: #{tpu_custom_call.1} parent=5 // pred_check_branch
        %285 = sbr.rel (%p283) target = $region52
      $region51: #{tpu_custom_call.1} parent=5 // pred_region
        %s286 = ssub.s32 %s13, 2
      $region52: #{tpu_custom_call.1} parent=5 // pred_fallthru
        _
    $region6: #{tpu_custom_call.1} parent=1 // loop_footer
      %s17 = sadd.s32 1, %s13
    $region7: #{tpu_custom_call.1} parent=1 // loop_footer_branch
      %12 = sbr.rel target = $region3
    $region8: #{tpu_custom_call.1} parent=1 // loop_exit
      _
    %287 = vsyncpa [#allocation5], 1
    %s288 = scalar_lea.sflag [#allocation5], 1
    %289 = vsyncpa %s288, 1
    %290 = vsyncpa [#allocation6], 1
    %s291 = scalar_lea.sflag [#allocation6], 1
    %292 = vsyncpa %s291, 1

</llo_original>
